<compile_context>
chip_gen: v5e
topology: v5e:2x2
jax: 0.10.0
libtpu: 0.0.40
codegen_flags: <defaults>
</compile_context>

<pallas_src>
from typing import List, Mapping, Sequence, Tuple, TypeVar, Union

import jax
import jax.numpy as jnp
from jax.experimental import pallas as pl
from jax.experimental.pallas import tpu as pltpu

T = TypeVar("T")

# Default tile sizes: (tn, tc) int32 compare intermediates stay ~2 MiB, safe for
# v5e's 16 MiB default scoped VMEM; sweep larger on v6e/v7x if desired.
_TILE_N = 512
_TILE_C = 1024

_KEY_PAD = jnp.iinfo(jnp.int32).min          # never matches a real query index
_IDX_PAD = jnp.iinfo(jnp.int32).min + 1      # never matches a real/padded key


def _round_up(x: int, m: int) -> int:
    return ((x + m - 1) // m) * m


def _pos_kernel(idx_ref, keys_ref, out_ref, acc_ref):
    # idx_ref : (tn, 1)  int32  -- query indices for this N tile (constant over j)
    # keys_ref: (1, tc)  int32  -- key-table slice for this C tile
    # out_ref : (tn, 1)  int32  -- matched key position per query (written at last j)
    # acc_ref : (tn, 1)  int32  -- VMEM running max of matched (global) column ids
    j = pl.program_id(1)

    @pl.when(j == 0)
    def _init():
        acc_ref[...] = jnp.zeros_like(acc_ref)

    tn = idx_ref.shape[0]
    tc = keys_ref.shape[1]
    match = idx_ref[...] == keys_ref[...]                                # (tn, tc)
    col = jax.lax.broadcasted_iota(jnp.int32, (tn, tc), 1) + j * tc      # global col ids
    pos = jnp.max(jnp.where(match, col, 0), axis=-1, keepdims=True)      # (tn, 1)
    acc_ref[...] = jnp.maximum(acc_ref[...], pos)

    @pl.when(j == pl.num_programs(1) - 1)
    def _store():
        out_ref[...] = acc_ref[...]


def indices_to_positions(
    indices: jax.Array,
    keys: jax.Array,
    *,
    tile_n: int = _TILE_N,
    tile_c: int = _TILE_C,
) -> Tuple[jax.Array, int]:
    """Fused Pallas kernel: position of each query index in the key table.

    Returns (positions_padded[(n_pad,)], n) where positions_padded[i] is the
    index j with keys[j] == indices[i] (0 if no key matches); rows beyond n are
    padding.
    """
    n = int(indices.shape[0])
    c = int(keys.shape[0])

    # Effective tile sizes: full (padded) extent for small problems, otherwise
    # the sublane-/lane-aligned defaults.
    tn = min(tile_n, _round_up(n, 8))
    tc = min(tile_c, _round_up(c, 128))
    n_pad = _round_up(n, tn)
    c_pad = _round_up(c, tc)

    idx = indices.astype(jnp.int32)
    if n_pad != n:
        idx = jnp.concatenate([idx, jnp.full((n_pad - n,), _IDX_PAD, jnp.int32)])
    idx2d = idx.reshape(n_pad, 1)

    key = keys.astype(jnp.int32)
    if c_pad != c:
        key = jnp.concatenate([key, jnp.full((c_pad - c,), _KEY_PAD, jnp.int32)])
    keys2d = key.reshape(1, c_pad)

    grid = (n_pad // tn, c_pad // tc)

    positions = pl.pallas_call(
        _pos_kernel,
        out_shape=jax.ShapeDtypeStruct((n_pad, 1), jnp.int32),
        grid=grid,
        in_specs=[
            pl.BlockSpec((tn, 1), lambda i, j: (i, 0)),    # queries: vary with N only
            pl.BlockSpec((1, tc), lambda i, j: (0, j)),    # key table: vary with C only
        ],
        out_specs=pl.BlockSpec((tn, 1), lambda i, j: (i, 0)),
        scratch_shapes=[pltpu.VMEM((tn, 1), jnp.int32)],
        compiler_params=pltpu.CompilerParams(
            # N independent (megacore-shardable), C is the in-kernel reduction.
            dimension_semantics=("parallel", "arbitrary"),
        ),
    )(idx2d, keys2d)
    return positions[:, 0], n


class IndicesToNames:
    """JAX/Pallas port of torchoutil IndicesToNames: indices -> List of names."""

    def __init__(self, idx_to_name: Mapping[int, T]) -> None:
        self.idx_to_name = dict(idx_to_name)
        self._keys = sorted(self.idx_to_name.keys())
        if any(k in (int(_KEY_PAD), int(_IDX_PAD)) for k in self._keys):
            raise ValueError("Key table collides with int32 padding sentinels.")
        self._names = [self.idx_to_name[k] for k in self._keys]
        self._keys_arr = jnp.asarray(self._keys, dtype=jnp.int32)

    def __call__(self, indices: Union[Sequence[int], jax.Array]) -> List[T]:
        if isinstance(indices, (list, tuple)):
            idx_arr = jnp.asarray(indices, dtype=jnp.int32)
        else:
            idx_arr = jnp.asarray(indices).astype(jnp.int32)

        # Device: fused match + position reduction (single Pallas kernel).
        positions, n = indices_to_positions(idx_arr, self._keys_arr)
        # NOTE: an index absent from the key table decodes to position 0 ->
        # names[0] (same tacit "valid keys only" contract as the dict lookup).
        pos_host = jax.device_get(positions[:n])

        # TODO(synk): the final int -> Python-object (string) name materialization
        # is a host-side dict/list lookup with no Pallas equivalent.
        return [self._names[int(p)] for p in pos_host]


if __name__ == "__main__":
    # Deterministic small example: 16 classes, 8 query indices from PRNGKey(0).
    num_classes = 16
    n_queries = 8
    idx_to_name = {i: f"class_{i}" for i in range(num_classes)}

    key = jax.random.PRNGKey(0)
    rand_idx = jax.random.randint(key, (n_queries,), 0, num_classes, dtype=jnp.int32)

    module = IndicesToNames(idx_to_name)
    keys_arr = jnp.asarray(sorted(idx_to_name.keys()), dtype=jnp.int32)

    # 1) Run the fused Pallas kernel once and block on its result.
    positions, n = indices_to_positions(rand_idx, keys_arr)
    positions = jax.block_until_ready(positions)
    pos = positions[:n]

    # Reference check of the kernel output in plain JAX.
    ref_pos = jnp.argmax(rand_idx[:, None] == keys_arr[None, :], axis=1).astype(jnp.int32)
    assert pos.shape == (n_queries,)
    assert bool(jnp.array_equal(pos, ref_pos))

    # 2) Multi-tile check (exercises N/C tiling, padding and the C reduction).
    big_classes = 300
    big_queries = 1000
    big_keys = jnp.arange(big_classes, dtype=jnp.int32)
    big_idx = jax.random.randint(
        jax.random.PRNGKey(1), (big_queries,), 0, big_classes, dtype=jnp.int32
    )
    big_pos, bn = indices_to_positions(big_idx, big_keys, tile_n=256, tile_c=128)
    big_pos = jax.block_until_ready(big_pos)[:bn]
    big_ref = jnp.argmax(big_idx[:, None] == big_keys[None, :], axis=1).astype(jnp.int32)
    assert bool(jnp.array_equal(big_pos, big_ref))

    # 3) Full module forward: indices -> names.
    names = module(rand_idx)
    expected = [idx_to_name[int(i)] for i in jax.device_get(rand_idx)]
    assert names == expected

    print("KERNEL_OK")
</pallas_src>

<mosaic_0001>
module attributes {stable_mosaic.version = 11 : i64} {
  func.func @_pos_kernel(%arg0: i32, %arg1: i32, %arg2: memref<8x1xi32, #tpu.memory_space<vmem>>, %arg3: memref<1x128xi32, #tpu.memory_space<vmem>>, %arg4: memref<8x1xi32, #tpu.memory_space<vmem>>, %arg5: memref<8x1xi32, #tpu.memory_space<vmem>>) attributes {dimension_semantics = [#tpu.dimension_semantics<parallel>, #tpu.dimension_semantics<arbitrary>], iteration_bounds = array<i64: 1, 1>, scalar_prefetch = 0 : i64, scratch_operands = 1 : i64, tpu.core_type = #tpu.core_type<tc>, window_params = [{transform_indices = @transform_0, window_bounds = array<i64: 8, 1>}, {transform_indices = @transform_1, window_bounds = array<i64: 1, 128>}, {transform_indices = @transform_2, window_bounds = array<i64: 8, 1>}]} {
    %c0_i32 = arith.constant 0 : i32
    %0 = arith.cmpi eq, %arg1, %c0_i32 : i32
    %1 = arith.extui %0 : i1 to i32
    %c0_i32_0 = arith.constant 0 : i32
    %2 = arith.cmpi ne, %1, %c0_i32_0 : i32
    scf.if %2 {
      %c0_i32_11 = arith.constant 0 : i32
      %22 = vector.broadcast %c0_i32_11 : i32 to vector<8x1xi32>
      %c0_12 = arith.constant 0 : index
      %c0_13 = arith.constant 0 : index
      %23 = vector.load %arg5[%c0_12, %c0_13] : memref<8x1xi32, #tpu.memory_space<vmem>>, vector<8x1xi32>
      tpu.vector_store %arg5[%c0_12, %c0_13], %22 {strides = array<i32>} : memref<8x1xi32, #tpu.memory_space<vmem>>, vector<8x1xi32>,
    } else {
    }
    %c0 = arith.constant 0 : index
    %c0_1 = arith.constant 0 : index
    %3 = vector.load %arg2[%c0, %c0_1] : memref<8x1xi32, #tpu.memory_space<vmem>>, vector<8x1xi32>
    %c0_2 = arith.constant 0 : index
    %c0_3 = arith.constant 0 : index
    %4 = vector.load %arg3[%c0_2, %c0_3] : memref<1x128xi32, #tpu.memory_space<vmem>>, vector<1x128xi32>
    %5 = vector.broadcast %3 : vector<8x1xi32> to vector<8x128xi32>
    %6 = vector.broadcast %4 : vector<1x128xi32> to vector<8x128xi32>
    %7 = arith.cmpi eq, %5, %6 : vector<8x128xi32>
    %8 = tpu.iota {dimensions = array<i32: 1>} : vector<8x128xi32>
    %c128_i32 = arith.constant 128 : i32
    %9 = arith.muli %arg1, %c128_i32 : i32
    %10 = vector.broadcast %9 : i32 to vector<8x128xi32>
    %11 = arith.addi %8, %10 : vector<8x128xi32>
    %c0_i32_4 = arith.constant 0 : i32
    %12 = vector.broadcast %c0_i32_4 : i32 to vector<8x128xi32>
    %13 = arith.select %7, %11, %12 : vector<8x128xi1>, vector<8x128xi32>
    %cst = arith.constant dense<-2147483648> : vector<8xi32>
    %14 = vector.multi_reduction <maxsi>, %13, %cst [1] : vector<8x128xi32> to vector<8xi32>
    %15 = vector.shape_cast %14 : vector<8xi32> to vector<8x1xi32>
    %c0_5 = arith.constant 0 : index
    %c0_6 = arith.constant 0 : index
    %16 = vector.load %arg5[%c0_5, %c0_6] : memref<8x1xi32, #tpu.memory_space<vmem>>, vector<8x1xi32>
    %17 = arith.maxsi %16, %15 : vector<8x1xi32>
    %c0_7 = arith.constant 0 : index
    %c0_8 = arith.constant 0 : index
    %18 = vector.load %arg5[%c0_7, %c0_8] : memref<8x1xi32, #tpu.memory_space<vmem>>, vector<8x1xi32>
    tpu.vector_store %arg5[%c0_7, %c0_8], %17 {strides = array<i32>} : memref<8x1xi32, #tpu.memory_space<vmem>>, vector<8x1xi32>,
    %c0_i32_9 = arith.constant 0 : i32
    %19 = arith.cmpi eq, %arg1, %c0_i32_9 : i32
    %20 = arith.extui %19 : i1 to i32
    %c0_i32_10 = arith.constant 0 : i32
    %21 = arith.cmpi ne, %20, %c0_i32_10 : i32
    scf.if %21 {
      %c0_11 = arith.constant 0 : index
      %c0_12 = arith.constant 0 : index
      %22 = vector.load %arg5[%c0_11, %c0_12] : memref<8x1xi32, #tpu.memory_space<vmem>>, vector<8x1xi32>
      %c0_13 = arith.constant 0 : index
      %c0_14 = arith.constant 0 : index
      %23 = vector.load %arg4[%c0_13, %c0_14] : memref<8x1xi32, #tpu.memory_space<vmem>>, vector<8x1xi32>
      tpu.vector_store %arg4[%c0_13, %c0_14], %22 {strides = array<i32>} : memref<8x1xi32, #tpu.memory_space<vmem>>, vector<8x1xi32>,
    } else {
    }
    return
  }
  func.func @transform_0(%arg0: i32, %arg1: i32) -> (i32, i32) {
    %c0_i32 = arith.constant 0 : i32
    %c0_i32_0 = arith.constant 0 : i32
    return %arg0, %c0_i32 : i32, i32
  }
  func.func @transform_1(%arg0: i32, %arg1: i32) -> (i32, i32) {
    %c0_i32 = arith.constant 0 : i32
    %c0_i32_0 = arith.constant 0 : i32
    return %c0_i32, %arg1 : i32, i32
  }
  func.func @transform_2(%arg0: i32, %arg1: i32) -> (i32, i32) {
    %c0_i32 = arith.constant 0 : i32
    %c0_i32_0 = arith.constant 0 : i32
    return %arg0, %c0_i32 : i32, i32
  }
}

</mosaic_0001>

<llo_original>
// kernel: tpu_custom_call.1
$region0: #{tpu_custom_call.1}
  #allocation0 [shape = 'u32[]', space=smem, size = 0x4, offset = 0x4, fixed_abs, tag = 'smem constant byte address 0x4 - core index']
  #allocation1 [shape = 'u32[72,128]{1,0:T(1,128)}', space=vmem, size = 0x9000, scoped, tag = 'internal scratch']
  #allocation2 [shape = 's32[8,1]{1,0:T(8,128)}', space=vmem, size = 0x1000, scoped, tag = 'scratch operand']
  %s0 = inlined_call_operand.vmem [shape: s32[8,1], index: 0, kind: input, shape index: {}]
  %s1 = inlined_call_operand.vmem [shape: s32[1,128], index: 1, kind: input, shape index: {}]
  %s2 = inlined_call_operand.vmem [shape: s32[8,1], index: 2, kind: output, shape index: {}]
  %s3 = sld [smem:[#allocation0]]
  $region26: #{tpu_custom_call.1} parent=0
    _
  %s5 = ssub.s32 1, %s3
  %s6 = scalar_select 0, %s5, %s3
  // Predicated region
  $region2: #{tpu_custom_call.1} parent=0 // pred_check
    _
  $region3: #{tpu_custom_call.1} parent=0 // pred_check_branch
    %8 = sbr.rel (0) target = $region5
  $region4: #{tpu_custom_call.1} parent=0 // pred_region
    _
  $region5: #{tpu_custom_call.1} parent=0 // pred_fallthru
    _
  // Predicated region
  $region6: #{tpu_custom_call.1} parent=0 // pred_check
    _
  $region7: #{tpu_custom_call.1} parent=0 // pred_check_branch
    %10 = sbr.rel (0) target = $region9
  $region8: #{tpu_custom_call.1} parent=0 // pred_region
    _
  $region9: #{tpu_custom_call.1} parent=0 // pred_fallthru
    _
  %p11 = scmp.eq.s32.totalorder 0, 0
  // Predicated region
  $region10: #{tpu_custom_call.1} parent=0 // pred_check
    %p12 = pneg %p11
  $region11: #{tpu_custom_call.1} parent=0 // pred_check_branch
    %14 = sbr.rel (%p12) target = $region13
  $region12: #{tpu_custom_call.1} parent=0 // pred_region
    %vm15 = vcmask 7168
    %16 = vst.msk [vmem:[#allocation2] sm:$0xff] %vm15, 0
  $region13: #{tpu_custom_call.1} parent=0 // pred_fallthru
    _
  %v17 = vld [vmem:[%s0] sm:$0xff]
  %v18 = vld [vmem:[%s1] sm:$0x1]
  %19 = vset.pattern.permute.xlu0 0
  %20 = vperm.xlu0 %19, %v17
  %v21 = vpop.permute.xlu0 %20
  %v22 = vperm.slane %v18, 0
  %vm23 = vcmp.eq.s32.totalorder %v21, %v22
  %v24 = vlaneseq
  %v25 = vand.u32 %v24, 127
  %s26 = smul.u32 0, 128
  %v27 = vstv %s26
  %v28 = vadd.s32 %v25, %v27
  %v29 = vsel %vm23, %v28, 0
  %v30 = vand.u32 %v29, 65535
  %v31 = vshra.s32 %v29, 16
  %v32 = vcvt.s32.f32 %v30
  %v33 = vcvt.s32.f32 %v31
  %34 = vmax.xlane.f32.xlu0 %v33
  %v35 = vpop.xlane.xlu0 %34
  %vm36 = vcmp.eq.f32.partialorder %v33, %v35
  %v37 = vsel %vm36, %v32, -inf
  %38 = vmax.xlane.f32.xlu0 %v37
  %v39 = vpop.xlane.xlu0 %38
  %v40 = vcvt.f32.s32 %v39
  %v41 = vcvt.f32.s32 %v35
  %v42 = vshll.u32 %v41, 16
  %v43 = vadd.s32 %v42, %v40
  %v44 = vld [vmem:[#allocation2] sm:$0xff]
  %vm45 = vcmp.gt.s32.totalorder %v44, %v43
  %v46 = vsel %vm45, %v44, %v43
  %vm47 = vcmask 7168
  %48 = vst.msk [vmem:[#allocation2] sm:$0xff] %vm47, %v46
  // Predicated region
  $region14: #{tpu_custom_call.1} parent=0 // pred_check
    %p49 = pneg %p11
  $region15: #{tpu_custom_call.1} parent=0 // pred_check_branch
    %51 = sbr.rel (%p49) target = $region17
  $region16: #{tpu_custom_call.1} parent=0 // pred_region
    %v52 = vld [vmem:[#allocation2] sm:$0xff]
    %53 = vst.msk [vmem:[%s2] sm:$0xff] %vm47, %v52
  $region17: #{tpu_custom_call.1} parent=0 // pred_fallthru
    _
  // Predicated region
  $region18: #{tpu_custom_call.1} parent=0 // pred_check
    _
  $region19: #{tpu_custom_call.1} parent=0 // pred_check_branch
    %55 = sbr.rel (0) target = $region21
  $region20: #{tpu_custom_call.1} parent=0 // pred_region
    _
  $region21: #{tpu_custom_call.1} parent=0 // pred_fallthru
    _
  // Predicated region
  $region22: #{tpu_custom_call.1} parent=0 // pred_check
    _
  $region23: #{tpu_custom_call.1} parent=0 // pred_check_branch
    %57 = sbr.rel (0) target = $region25
  $region24: #{tpu_custom_call.1} parent=0 // pred_region
    _
  $region25: #{tpu_custom_call.1} parent=0 // pred_fallthru
    _

</llo_original>
